<compile_context>
chip_gen: v6e
topology: v6e:2x2x1
jax: 0.10.0
libtpu: 0.0.40
codegen_flags: <defaults>
</compile_context>

<pallas_src>
import functools

import jax
import jax.numpy as jnp
from jax.experimental import pallas as pl
from jax.experimental.pallas import tpu as pltpu

_BN_EPS = 1e-5
_VMEM_TILE_BUDGET = 18 * 1024 * 1024   # block buffers only; leaves headroom
_VMEM_LIMIT_BYTES = 32 * 1024 * 1024   # safe on v5e/v6e (128 MiB) and v7x (64 MiB)
_TK_CAP = 1536
_TN_CAP = 512
_TM_CANDIDATES = (2048, 1024, 512, 256)
_SQRT_2_OVER_PI = 0.7978845608028654


# ---------------------------------------------------------------------------
# Fused (matmul * per-column scale + shift -> activation) Pallas kernels
# ---------------------------------------------------------------------------

def _round_up(x: int, m: int) -> int:
    return ((x + m - 1) // m) * m


def _largest_tile(dim: int, cap: int) -> int:
    """Largest multiple of 128 that divides dim (dim % 128 == 0), <= cap."""
    best = 128
    t = 128
    while t <= min(dim, cap):
        if dim % t == 0:
            best = t
        t += 128
    return best


def _select_tm(M: int, tk: int, tn: int, in_bytes: int, out_bytes: int) -> int:
    """Biggest M tile whose double-buffered VMEM footprint fits the budget."""
    tk_p = _round_up(tk, 128)
    tn_p = _round_up(tn, 128)
    m_cap = _round_up(M, 256)
    for tm in _TM_CANDIDATES:
        if tm > m_cap:
            continue
        footprint = (2 * tm * tk_p * in_bytes      # x, double-buffered
                     + 2 * tk_p * tn_p * in_bytes  # w, double-buffered
                     + 2 * tm * tn_p * out_bytes   # out, double-buffered
                     + tm * tn_p * 4)              # f32 accumulator scratch
        if footprint <= _VMEM_TILE_BUDGET:
            return tm
    return 256


def _apply_epilogue(y, scale, shift, activation):
    y = y * scale + shift
    if activation == "gelu":
        # tanh-approx GELU (tanh runs on the EUP slot).
        y = 0.5 * y * (1.0 + jnp.tanh(_SQRT_2_OVER_PI
                                      * (y + 0.044715 * y * y * y)))
    elif activation == "sigmoid":
        # sigmoid(y) == 0.5*(1+tanh(y/2)): EUP, no divide, exactly in [0, 1].
        y = 0.5 * (1.0 + jnp.tanh(0.5 * y))
    return y


def _fused_matmul_kernel(x_ref, w_ref, scale_ref, shift_ref, o_ref, acc_ref,
                         *, activation):
    """General path: K split across the last (reduction) grid axis."""
    k = pl.program_id(2)

    @pl.when(k == 0)
    def _():
        acc_ref[...] = jnp.zeros_like(acc_ref)

    # w is already laid out (K, N): straight contraction, no in-kernel transpose.
    acc_ref[...] += jnp.dot(x_ref[...], w_ref[...],
                            preferred_element_type=jnp.float32)

    @pl.when(k == pl.num_programs(2) - 1)
    def _():
        y = _apply_epilogue(acc_ref[...], scale_ref[...], shift_ref[...],
                            activation)
        o_ref[...] = y.astype(o_ref.dtype)


def _fused_matmul_k1_kernel(x_ref, w_ref, scale_ref, shift_ref, o_ref,
                            *, activation):
    """Single-K-tile specialization: no accumulator scratch, no RMW passes."""
    y = jnp.dot(x_ref[...], w_ref[...], preferred_element_type=jnp.float32)
    y = _apply_epilogue(y, scale_ref[...], shift_ref[...], activation)
    o_ref[...] = y.astype(o_ref.dtype)


def fused_matmul_scale_act(x2d, w2d, scale, shift, *, activation="none",
                           out_dtype=jnp.bfloat16,
                           compute_dtype=jnp.bfloat16):
    """y = act((x2d @ w2d) * scale + shift); scale/shift broadcast over rows.

    x2d: (M, K); w2d: (K, N) (already transposed); scale/shift: (N,).
    """
    M, K = x2d.shape
    K2, N = w2d.shape
    assert K2 == K and scale.shape == (N,) and shift.shape == (N,)

    in_bytes = jnp.dtype(compute_dtype).itemsize
    out_bytes = jnp.dtype(out_dtype).itemsize

    # K tiling: lane-dense tiles when 128-aligned, else one full-extent tile.
    if K % 128 == 0:
        tk = _largest_tile(K, _TK_CAP)
        nk = K // tk
    else:
        tk = K                      # small in this network (<= 640)
        nk = 1
    # N tiling: up to 512-wide tiles; full extent when not 128-aligned.
    if N % 128 == 0:
        tn = _largest_tile(N, _TN_CAP)
        gn = N // tn
    else:
        tn = N
        gn = 1

    tm = _select_tm(M, tk, tn, in_bytes, out_bytes)
    m_pad = _round_up(M, tm)
    gm = m_pad // tm

    x_c = x2d.astype(compute_dtype)
    if m_pad != M:
        x_c = jnp.pad(x_c, ((0, m_pad - M), (0, 0)))
    w_c = w2d.astype(compute_dtype)
    sc = scale.astype(jnp.float32).reshape(1, N)
    sh = shift.astype(jnp.float32).reshape(1, N)

    if nk == 1:
        grid = (gm, gn)
        kernel = functools.partial(_fused_matmul_k1_kernel,
                                   activation=activation)
        in_specs = [
            pl.BlockSpec((tm, tk), lambda i, j: (i, 0)),   # x tile
            pl.BlockSpec((tk, tn), lambda i, j: (0, j)),   # W_eff (K, N)
            pl.BlockSpec((1, tn), lambda i, j: (0, j)),    # per-col scale
            pl.BlockSpec((1, tn), lambda i, j: (0, j)),    # per-col shift
        ]
        out_spec = pl.BlockSpec((tm, tn), lambda i, j: (i, j))
        scratch = ()
        dims = ("parallel", "parallel")
    else:
        grid = (gm, gn, nk)
        kernel = functools.partial(_fused_matmul_kernel,
                                   activation=activation)
        in_specs = [
            pl.BlockSpec((tm, tk), lambda i, j, k: (i, k)),
            pl.BlockSpec((tk, tn), lambda i, j, k: (k, j)),
            pl.BlockSpec((1, tn), lambda i, j, k: (0, j)),
            pl.BlockSpec((1, tn), lambda i, j, k: (0, j)),
        ]
        out_spec = pl.BlockSpec((tm, tn), lambda i, j, k: (i, j))
        scratch = (pltpu.VMEM((tm, tn), jnp.float32),)
        dims = ("parallel", "parallel", "arbitrary")

    out = pl.pallas_call(
        kernel,
        out_shape=jax.ShapeDtypeStruct((m_pad, N), out_dtype),
        grid_spec=pltpu.PrefetchScalarGridSpec(
            num_scalar_prefetch=0,
            grid=grid,
            in_specs=in_specs,
            out_specs=out_spec,
            scratch_shapes=scratch),
        compiler_params=pltpu.CompilerParams(
            dimension_semantics=dims,
            vmem_limit_bytes=_VMEM_LIMIT_BYTES),
    )(x_c, w_c, sc, sh)

    return out if m_pad == M else out[:M]


# ---------------------------------------------------------------------------
# additive-decomposed conv / BN / GELU blocks (inference semantics)
# ---------------------------------------------------------------------------

def _im2col(x_nhwc, ksize, padding):
    """Stride-1 im2col; returns (M, K) with K ordered (kh, kw, Cin)."""
    B, H, W, C = x_nhwc.shape
    if ksize == 1 and padding == 0:
        return x_nhwc.reshape(B * H * W, C), (B, H, W)
    xp = jnp.pad(x_nhwc, ((0, 0), (padding, padding), (padding, padding), (0, 0)))
    Ho = H + 2 * padding - ksize + 1
    Wo = W + 2 * padding - ksize + 1
    cols = [xp[:, dy:dy + Ho, dx:dx + Wo, :]
            for dy in range(ksize) for dx in range(ksize)]
    patches = jnp.concatenate(cols, axis=-1)
    return patches.reshape(B * Ho * Wo, ksize * ksize * C), (B, Ho, Wo)


def conv2d_scale_act(x_nhwc, w_oihw, scale, shift, *, padding, activation,
                     compute_dtype=jnp.bfloat16, out_dtype=jnp.bfloat16):
    O, I, kh, kw = w_oihw.shape
    x2d, (B, Ho, Wo) = _im2col(x_nhwc.astype(compute_dtype), kh, padding)
    # (O,I,kh,kw) -> (kh,kw,I,O) -> (K,N): matches im2col ordering and gives the
    # kernel a pre-transposed weight (no in-kernel transpose).
    w2d = jnp.transpose(w_oihw, (2, 3, 1, 0)).reshape(kh * kw * I, O)
    y2d = fused_matmul_scale_act(x2d, w2d, scale, shift, activation=activation,
                                 out_dtype=out_dtype,
                                 compute_dtype=compute_dtype)
    return y2d.reshape(B, Ho, Wo, O)


def conv_bn_gelu(x, conv_p, bn_p):
    # additive_decomposed_weight.forward(): dropout(dense)+sparse1; dropout=id (eval).
    w_eff = conv_p["dense_w"] + conv_p["sparse_w1"]
    gamma = bn_p["gamma_dense"] + bn_p["gamma_sparse1"]
    beta = bn_p["beta_dense"] + bn_p["beta_sparse1"]
    # Eval-mode BN folded into a per-channel affine (fused into the matmul epilogue).
    scale = gamma * jax.lax.rsqrt(bn_p["running_var"] + _BN_EPS)
    shift = beta - bn_p["running_mean"] * scale
    return conv2d_scale_act(x, w_eff, scale, shift, padding=1, activation="gelu")


def double_conv(x, p):
    x = conv_bn_gelu(x, p["conv1"], p["bn1"])
    x = conv_bn_gelu(x, p["conv2"], p["bn2"])
    return x


def maxpool2x2(x):
    B, H, W, C = x.shape
    return x.reshape(B, H // 2, 2, W // 2, 2, C).max(axis=(2, 4))


def nearest_upsample(x, size):
    B, H, W, C = x.shape
    Ho, Wo = size
    hi = (jnp.arange(Ho) * H) // Ho   # matches PyTorch 'nearest'
    wi = (jnp.arange(Wo) * W) // Wo
    return x[:, hi][:, :, wi]


def upconv(x, p, size):
    return double_conv(nearest_upsample(x, size), p)


def out_conv(x, p, use_sigmoid):
    w_eff = p["dense_w"] + p["sparse_w1"]
    bias = p["bias_dense"] + p["bias_sparse1"]     # add_conv2d bias branch
    scale = jnp.ones_like(bias)
    act = "sigmoid" if use_sigmoid else "none"
    # Tiny 1x1 head kept in f32 (per the review's numerics note).
    return conv2d_scale_act(x, w_eff, scale, bias, padding=0, activation=act,
                            compute_dtype=jnp.float32, out_dtype=jnp.float32)


# ---------------------------------------------------------------------------
# Parameter init mirroring the PyTorch module
# ---------------------------------------------------------------------------

def init_add_conv2d(key, in_ch, out_ch, ksize, *, bias=False):
    shape = (out_ch, in_ch, ksize, ksize)
    p = {
        "dense_w": jax.random.normal(key, shape, jnp.float32),   # torch.randn
        "sparse_w1": jnp.zeros(shape, jnp.float32),              # scale * zeros
        # sparse_weight2 exists in the module but is unused when sparse1=True.
    }
    if bias:
        # additive_decomposed_weight(out_ch, value=0): dense=0*ones, sparse1=0.
        p["bias_dense"] = jnp.zeros((out_ch,), jnp.float32)
        p["bias_sparse1"] = jnp.zeros((out_ch,), jnp.float32)
    return p


def init_add_bn2d(channels):
    return {
        "gamma_dense": jnp.ones((channels,), jnp.float32),    # value=1
        "gamma_sparse1": jnp.zeros((channels,), jnp.float32),
        "beta_dense": jnp.zeros((channels,), jnp.float32),    # value=0
        "beta_sparse1": jnp.zeros((channels,), jnp.float32),
        "running_mean": jnp.zeros((channels,), jnp.float32),  # fresh BN stats
        "running_var": jnp.ones((channels,), jnp.float32),
    }


def init_double_conv(key, cin, cout):
    k1, k2 = jax.random.split(key)
    return {
        "conv1": init_add_conv2d(k1, cin, cout, 3),
        "bn1": init_add_bn2d(cout),
        "conv2": init_add_conv2d(k2, cout, cout, 3),
        "bn2": init_add_bn2d(cout),
    }


def init_unet(key, in_channels, out_channels):
    f = [32, 64, 128, 256, 512]
    ks = jax.random.split(key, 14)
    return {
        "conv_l1": init_double_conv(ks[0], in_channels, f[0]),
        "conv_l2": init_double_conv(ks[1], f[0], f[1]),
        "conv_l3": init_double_conv(ks[2], f[1], f[2]),
        "conv_l4": init_double_conv(ks[3], f[2], f[3]),
        "conv_l5": init_double_conv(ks[4], f[3], f[4]),
        "deconv_u4": init_double_conv(ks[5], f[4], f[3]),
        "conv_u4": init_double_conv(ks[6], f[4], f[3]),
        "deconv_u3": init_double_conv(ks[7], f[3], f[2]),
        "conv_u3": init_double_conv(ks[8], f[3], f[2]),
        "deconv_u2": init_double_conv(ks[9], f[2], f[1]),
        "conv_u2": init_double_conv(ks[10], f[2], f[1]),
        "deconv_u1": init_double_conv(ks[11], f[1], f[0]),
        "conv_u1": init_double_conv(ks[12], f[1], f[0]),
        "out": init_add_conv2d(ks[13], f[0], out_channels, 1, bias=True),
    }


def unet_forward(params, x_nchw, *, out_channels):
    # NCHW -> NHWC, bf16 activations between layers (f32 accumulation inside
    # each fused matmul; the head runs in f32).
    x = jnp.transpose(x_nchw, (0, 2, 3, 1)).astype(jnp.bfloat16)
    o1 = double_conv(x, params["conv_l1"])
    o2 = double_conv(maxpool2x2(o1), params["conv_l2"])
    o3 = double_conv(maxpool2x2(o2), params["conv_l3"])
    o4 = double_conv(maxpool2x2(o3), params["conv_l4"])
    o5 = double_conv(maxpool2x2(o4), params["conv_l5"])
    u4 = upconv(o5, params["deconv_u4"], (32, 32))
    o6 = double_conv(jnp.concatenate([u4, o4], axis=-1), params["conv_u4"])
    u3 = upconv(o6, params["deconv_u3"], (64, 64))
    o7 = double_conv(jnp.concatenate([u3, o3], axis=-1), params["conv_u3"])
    u2 = upconv(o7, params["deconv_u2"], (128, 128))
    o8 = double_conv(jnp.concatenate([u2, o2], axis=-1), params["conv_u2"])
    u1 = upconv(o8, params["deconv_u1"], (256, 256))
    o9 = double_conv(jnp.concatenate([u1, o1], axis=-1), params["conv_u1"])
    out = out_conv(o9, params["out"], use_sigmoid=(out_channels == 1))
    return jnp.transpose(out, (0, 3, 1, 2))          # NHWC -> NCHW


if __name__ == "__main__":
    # --- standalone checks of the fused Pallas matmul ---------------------
    kc = jax.random.PRNGKey(0)
    ka, kb, ksc, ksh = jax.random.split(kc, 4)

    # (a) f32 path, non-tile-aligned M/K/N -> full-extent K/N tiles, M padding,
    #     single-K specialization.
    a = jax.random.normal(ka, (300, 200), jnp.float32)
    b = jax.random.normal(kb, (200, 150), jnp.float32)
    sc = jax.random.normal(ksc, (150,), jnp.float32)
    sh = jax.random.normal(ksh, (150,), jnp.float32)
    got = jax.block_until_ready(
        fused_matmul_scale_act(a, b, sc, sh,
                               compute_dtype=jnp.float32,
                               out_dtype=jnp.float32))
    want = a @ b * sc + sh
    rel = float(jnp.max(jnp.abs(got - want)) / jnp.max(jnp.abs(want)))
    assert rel < 1e-2, rel

    # (b) bf16 operand path with a real K reduction (two 1536-wide K tiles).
    a = jax.random.normal(ka, (512, 3072), jnp.float32)
    b = jax.random.normal(kb, (3072, 256), jnp.float32)
    sc = jax.random.normal(ksc, (256,), jnp.float32)
    sh = jax.random.normal(ksh, (256,), jnp.float32)
    got = jax.block_until_ready(
        fused_matmul_scale_act(a, b, sc, sh)).astype(jnp.float32)
    want = a @ b * sc + sh
    rel = float(jnp.max(jnp.abs(got - want)) / jnp.max(jnp.abs(want)))
    assert rel < 2e-2, rel

    # --- full U-Net forward ------------------------------------------------
    # Spatial size is pinned to 256x256 by the module's hard-coded Upsample sizes.
    B, IN_CH, OUT_CH, H, W = 1, 3, 1, 256, 256
    kp, kx = jax.random.split(jax.random.PRNGKey(0))
    params = init_unet(kp, IN_CH, OUT_CH)
    # Small-amplitude input keeps the randn-initialised 26-conv stack finite.
    x = 0.01 * jax.random.normal(kx, (B, IN_CH, H, W), jnp.float32)

    fwd = jax.jit(functools.partial(unet_forward, out_channels=OUT_CH))
    y = jax.block_until_ready(fwd(params, x))

    assert y.shape == (B, OUT_CH, H, W)
    assert y.dtype == jnp.float32
    assert bool(jnp.all(jnp.isfinite(y)))
    assert bool(jnp.all((y >= 0.0) & (y <= 1.0)))    # sigmoid head
    print("KERNEL_OK")
</pallas_src>

<mosaic_0001>
module attributes {stable_mosaic.version = 11 : i64} {
  func.func @_fused_matmul_k1_kernel(%arg0: i32, %arg1: i32, %arg2: memref<512x200xf32, #tpu.memory_space<vmem>>, %arg3: memref<200x150xf32, #tpu.memory_space<vmem>>, %arg4: memref<1x150xf32, #tpu.memory_space<vmem>>, %arg5: memref<1x150xf32, #tpu.memory_space<vmem>>, %arg6: memref<512x150xf32, #tpu.memory_space<vmem>>) attributes {dimension_semantics = [#tpu.dimension_semantics<parallel>, #tpu.dimension_semantics<parallel>], iteration_bounds = array<i64: 1, 1>, scalar_prefetch = 0 : i64, scratch_operands = 0 : i64, tpu.core_type = #tpu.core_type<tc>, window_params = [{transform_indices = @transform_0, window_bounds = array<i64: 512, 200>}, {transform_indices = @transform_1, window_bounds = array<i64: 200, 150>}, {transform_indices = @transform_2, window_bounds = array<i64: 1, 150>}, {transform_indices = @transform_3, window_bounds = array<i64: 1, 150>}, {transform_indices = @transform_4, window_bounds = array<i64: 512, 150>}]} {
    %c0 = arith.constant 0 : index
    %c0_0 = arith.constant 0 : index
    %0 = vector.load %arg2[%c0, %c0_0] : memref<512x200xf32, #tpu.memory_space<vmem>>, vector<512x200xf32>
    %c0_1 = arith.constant 0 : index
    %c0_2 = arith.constant 0 : index
    %1 = vector.load %arg3[%c0_1, %c0_2] : memref<200x150xf32, #tpu.memory_space<vmem>>, vector<200x150xf32>
    %cst = arith.constant dense<0.000000e+00> : vector<512x150xf32>
    %2 = tpu.matmul %0, %1, %cst {dimension_numbers = #tpu.dot_dimension_numbers<[1], [0], [0], [1], [0, 0, 1, 1], [], []>} : vector<512x200xf32>, vector<200x150xf32>, vector<512x150xf32> -> vector<512x150xf32>
    %c0_3 = arith.constant 0 : index
    %c0_4 = arith.constant 0 : index
    %3 = vector.load %arg4[%c0_3, %c0_4] : memref<1x150xf32, #tpu.memory_space<vmem>>, vector<1x150xf32>
    %c0_5 = arith.constant 0 : index
    %c0_6 = arith.constant 0 : index
    %4 = vector.load %arg5[%c0_5, %c0_6] : memref<1x150xf32, #tpu.memory_space<vmem>>, vector<1x150xf32>
    %5 = vector.broadcast %3 : vector<1x150xf32> to vector<512x150xf32>
    %6 = arith.mulf %2, %5 : vector<512x150xf32>
    %7 = vector.broadcast %4 : vector<1x150xf32> to vector<512x150xf32>
    %8 = arith.addf %6, %7 : vector<512x150xf32>
    %c0_7 = arith.constant 0 : index
    %c0_8 = arith.constant 0 : index
    %9 = vector.load %arg6[%c0_7, %c0_8] : memref<512x150xf32, #tpu.memory_space<vmem>>, vector<512x150xf32>
    tpu.vector_store %arg6[%c0_7, %c0_8], %8 {strides = array<i32>} : memref<512x150xf32, #tpu.memory_space<vmem>>, vector<512x150xf32>,
    return
  }
  func.func @transform_0(%arg0: i32, %arg1: i32) -> (i32, i32) {
    %c0_i32 = arith.constant 0 : i32
    %c0_i32_0 = arith.constant 0 : i32
    return %arg0, %c0_i32 : i32, i32
  }
  func.func @transform_1(%arg0: i32, %arg1: i32) -> (i32, i32) {
    %c0_i32 = arith.constant 0 : i32
    %c0_i32_0 = arith.constant 0 : i32
    return %c0_i32, %arg1 : i32, i32
  }
  func.func @transform_2(%arg0: i32, %arg1: i32) -> (i32, i32) {
    %c0_i32 = arith.constant 0 : i32
    %c0_i32_0 = arith.constant 0 : i32
    return %c0_i32, %arg1 : i32, i32
  }
  func.func @transform_3(%arg0: i32, %arg1: i32) -> (i32, i32) {
    %c0_i32 = arith.constant 0 : i32
    %c0_i32_0 = arith.constant 0 : i32
    return %c0_i32, %arg1 : i32, i32
  }
  func.func @transform_4(%arg0: i32, %arg1: i32) -> (i32, i32) {
    %c0_i32 = arith.constant 0 : i32
    return %arg0, %arg1 : i32, i32
  }
}

</mosaic_0001>

<llo_original>
// kernel: tpu_custom_call.1
$region0: #{tpu_custom_call.1}
  #allocation0 [shape = 'u32[]', space=smem, size = 0x4, offset = 0x4, fixed_abs, tag = 'smem constant byte address 0x4 - core index']
  #allocation1 [shape = 'u32[144,128]{1,0:T(1,128)}', space=vmem, size = 0x12000, scoped, tag = 'internal scratch']
  %s0 = inlined_call_operand.vmem [shape: f32[512,200], index: 0, kind: input, shape index: {}]
  %s1 = inlined_call_operand.vmem [shape: f32[200,150], index: 1, kind: input, shape index: {}]
  %s2 = inlined_call_operand.vmem [shape: f32[1,150], index: 2, kind: input, shape index: {}]
  %s3 = inlined_call_operand.vmem [shape: f32[1,150], index: 3, kind: input, shape index: {}]
  %s4 = inlined_call_operand.vmem [shape: f32[512,150], index: 4, kind: output, shape index: {}]
  %s5 = sld [smem:[#allocation0]]
  $region26: #{tpu_custom_call.1} parent=0
    _
  %s7 = ssub.s32 1, %s5
  %s8 = scalar_select 0, %s7, %s5
  // Predicated region
  $region2: #{tpu_custom_call.1} parent=0 // pred_check
    _
  $region3: #{tpu_custom_call.1} parent=0 // pred_check_branch
    %10 = sbr.rel (0) target = $region5
  $region4: #{tpu_custom_call.1} parent=0 // pred_region
    _
  $region5: #{tpu_custom_call.1} parent=0 // pred_fallthru
    _
  // Predicated region
  $region6: #{tpu_custom_call.1} parent=0 // pred_check
    _
  $region7: #{tpu_custom_call.1} parent=0 // pred_check_branch
    %12 = sbr.rel (0) target = $region9
  $region8: #{tpu_custom_call.1} parent=0 // pred_region
    _
  $region9: #{tpu_custom_call.1} parent=0 // pred_fallthru
    _
  // Predicated region
  $region10: #{tpu_custom_call.1} parent=0 // pred_check
    _
  $region11: #{tpu_custom_call.1} parent=0 // pred_check_branch
    %14 = sbr.rel (0) target = $region13
  $region12: #{tpu_custom_call.1} parent=0 // pred_region
    _
  $region13: #{tpu_custom_call.1} parent=0 // pred_fallthru
    _
  // Predicated region
  $region14: #{tpu_custom_call.1} parent=0 // pred_check
    _
  $region15: #{tpu_custom_call.1} parent=0 // pred_check_branch
    %16 = sbr.rel (0) target = $region17
  $region16: #{tpu_custom_call.1} parent=0 // pred_region
    _
  $region17: #{tpu_custom_call.1} parent=0 // pred_fallthru
    _
  %v17 = vld [vmem:[%s0] sm:$0xff]
  %v18 = vld [vmem:[%s0 + $0x8] sm:$0xff]
  %v19 = vld [vmem:[%s0 + $0x10] sm:$0xff]
  %v20 = vld [vmem:[%s0 + $0x18] sm:$0xff]
  %v21 = vld [vmem:[%s0 + $0x20] sm:$0xff]
  %v22 = vld [vmem:[%s0 + $0x28] sm:$0xff]
  %v23 = vld [vmem:[%s0 + $0x30] sm:$0xff]
  %v24 = vld [vmem:[%s0 + $0x38] sm:$0xff]
  %v25 = vld [vmem:[%s0 + $0x40] sm:$0xff]
  %v26 = vld [vmem:[%s0 + $0x48] sm:$0xff]
  %v27 = vld [vmem:[%s0 + $0x50] sm:$0xff]
  %v28 = vld [vmem:[%s0 + $0x58] sm:$0xff]
  %v29 = vld [vmem:[%s0 + $0x60] sm:$0xff]
  %v30 = vld [vmem:[%s0 + $0x68] sm:$0xff]
  %v31 = vld [vmem:[%s0 + $0x70] sm:$0xff]
  %v32 = vld [vmem:[%s0 + $0x78] sm:$0xff]
  %v33 = vld [vmem:[%s0 + $0x80] sm:$0xff]
  %v34 = vld [vmem:[%s0 + $0x88] sm:$0xff]
  %v35 = vld [vmem:[%s0 + $0x90] sm:$0xff]
  %v36 = vld [vmem:[%s0 + $0x98] sm:$0xff]
  %v37 = vld [vmem:[%s0 + $0xa0] sm:$0xff]
  %v38 = vld [vmem:[%s0 + $0xa8] sm:$0xff]
  %v39 = vld [vmem:[%s0 + $0xb0] sm:$0xff]
  %v40 = vld [vmem:[%s0 + $0xb8] sm:$0xff]
  %v41 = vld [vmem:[%s0 + $0xc0] sm:$0xff]
  %v42 = vld [vmem:[%s0 + $0xc8] sm:$0xff]
  %v43 = vld [vmem:[%s0 + $0xd0] sm:$0xff]
  %v44 = vld [vmem:[%s0 + $0xd8] sm:$0xff]
  %v45 = vld [vmem:[%s0 + $0xe0] sm:$0xff]
  %v46 = vld [vmem:[%s0 + $0xe8] sm:$0xff]
  %v47 = vld [vmem:[%s0 + $0xf0] sm:$0xff]
  %v48 = vld [vmem:[%s0 + $0xf8] sm:$0xff]
  %v49 = vld [vmem:[%s0 + $0x100] sm:$0xff]
  %v50 = vld [vmem:[%s0 + $0x108] sm:$0xff]
  %v51 = vld [vmem:[%s0 + $0x110] sm:$0xff]
  %v52 = vld [vmem:[%s0 + $0x118] sm:$0xff]
  %v53 = vld [vmem:[%s0 + $0x120] sm:$0xff]
  %v54 = vld [vmem:[%s0 + $0x128] sm:$0xff]
  %v55 = vld [vmem:[%s0 + $0x130] sm:$0xff]
  %v56 = vld [vmem:[%s0 + $0x138] sm:$0xff]
  %v57 = vld [vmem:[%s0 + $0x140] sm:$0xff]
  %v58 = vld [vmem:[%s0 + $0x148] sm:$0xff]
  %v59 = vld [vmem:[%s0 + $0x150] sm:$0xff]
  %v60 = vld [vmem:[%s0 + $0x158] sm:$0xff]
  %v61 = vld [vmem:[%s0 + $0x160] sm:$0xff]
  %v62 = vld [vmem:[%s0 + $0x168] sm:$0xff]
  %v63 = vld [vmem:[%s0 + $0x170] sm:$0xff]
  %v64 = vld [vmem:[%s0 + $0x178] sm:$0xff]
  %v65 = vld [vmem:[%s0 + $0x180] sm:$0xff]
  %v66 = vld [vmem:[%s0 + $0x188] sm:$0xff]
  %v67 = vld [vmem:[%s0 + $0x190] sm:$0xff]
  %v68 = vld [vmem:[%s0 + $0x198] sm:$0xff]
  %v69 = vld [vmem:[%s0 + $0x1a0] sm:$0xff]
  %v70 = vld [vmem:[%s0 + $0x1a8] sm:$0xff]
  %v71 = vld [vmem:[%s0 + $0x1b0] sm:$0xff]
  %v72 = vld [vmem:[%s0 + $0x1b8] sm:$0xff]
  %v73 = vld [vmem:[%s0 + $0x1c0] sm:$0xff]
  %v74 = vld [vmem:[%s0 + $0x1c8] sm:$0xff]
  %v75 = vld [vmem:[%s0 + $0x1d0] sm:$0xff]
  %v76 = vld [vmem:[%s0 + $0x1d8] sm:$0xff]
  %v77 = vld [vmem:[%s0 + $0x1e0] sm:$0xff]
  %v78 = vld [vmem:[%s0 + $0x1e8] sm:$0xff]
  %v79 = vld [vmem:[%s0 + $0x1f0] sm:$0xff]
  %v80 = vld [vmem:[%s0 + $0x1f8] sm:$0xff]
  %v81 = vld [vmem:[%s0 + $0x200] sm:$0xff]
  %v82 = vld [vmem:[%s0 + $0x208] sm:$0xff]
  %v83 = vld [vmem:[%s0 + $0x210] sm:$0xff]
  %v84 = vld [vmem:[%s0 + $0x218] sm:$0xff]
  %v85 = vld [vmem:[%s0 + $0x220] sm:$0xff]
  %v86 = vld [vmem:[%s0 + $0x228] sm:$0xff]
  %v87 = vld [vmem:[%s0 + $0x230] sm:$0xff]
  %v88 = vld [vmem:[%s0 + $0x238] sm:$0xff]
  %v89 = vld [vmem:[%s0 + $0x240] sm:$0xff]
  %v90 = vld [vmem:[%s0 + $0x248] sm:$0xff]
  %v91 = vld [vmem:[%s0 + $0x250] sm:$0xff]
  %v92 = vld [vmem:[%s0 + $0x258] sm:$0xff]
  %v93 = vld [vmem:[%s0 + $0x260] sm:$0xff]
  %v94 = vld [vmem:[%s0 + $0x268] sm:$0xff]
  %v95 = vld [vmem:[%s0 + $0x270] sm:$0xff]
  %v96 = vld [vmem:[%s0 + $0x278] sm:$0xff]
  %v97 = vld [vmem:[%s0 + $0x280] sm:$0xff]
  %v98 = vld [vmem:[%s0 + $0x288] sm:$0xff]
  %v99 = vld [vmem:[%s0 + $0x290] sm:$0xff]
  %v100 = vld [vmem:[%s0 + $0x298] sm:$0xff]
  %v101 = vld [vmem:[%s0 + $0x2a0] sm:$0xff]
  %v102 = vld [vmem:[%s0 + $0x2a8] sm:$0xff]
  %v103 = vld [vmem:[%s0 + $0x2b0] sm:$0xff]
  %v104 = vld [vmem:[%s0 + $0x2b8] sm:$0xff]
  %v105 = vld [vmem:[%s0 + $0x2c0] sm:$0xff]
  %v106 = vld [vmem:[%s0 + $0x2c8] sm:$0xff]
  %v107 = vld [vmem:[%s0 + $0x2d0] sm:$0xff]
  %v108 = vld [vmem:[%s0 + $0x2d8] sm:$0xff]
  %v109 = vld [vmem:[%s0 + $0x2e0] sm:$0xff]
  %v110 = vld [vmem:[%s0 + $0x2e8] sm:$0xff]
  %v111 = vld [vmem:[%s0 + $0x2f0] sm:$0xff]
  %v112 = vld [vmem:[%s0 + $0x2f8] sm:$0xff]
  %v113 = vld [vmem:[%s0 + $0x300] sm:$0xff]
  %v114 = vld [vmem:[%s0 + $0x308] sm:$0xff]
  %v115 = vld [vmem:[%s0 + $0x310] sm:$0xff]
  %v116 = vld [vmem:[%s0 + $0x318] sm:$0xff]
  %v117 = vld [vmem:[%s0 + $0x320] sm:$0xff]
  %v118 = vld [vmem:[%s0 + $0x328] sm:$0xff]
  %v119 = vld [vmem:[%s0 + $0x330] sm:$0xff]
  %v120 = vld [vmem:[%s0 + $0x338] sm:$0xff]
  %v121 = vld [vmem:[%s0 + $0x340] sm:$0xff]
  %v122 = vld [vmem:[%s0 + $0x348] sm:$0xff]
  %v123 = vld [vmem:[%s0 + $0x350] sm:$0xff]
  %v124 = vld [vmem:[%s0 + $0x358] sm:$0xff]
  %v125 = vld [vmem:[%s0 + $0x360] sm:$0xff]
  %v126 = vld [vmem:[%s0 + $0x368] sm:$0xff]
  %v127 = vld [vmem:[%s0 + $0x370] sm:$0xff]
  %v128 = vld [vmem:[%s0 + $0x378] sm:$0xff]
  %v129 = vld [vmem:[%s0 + $0x380] sm:$0xff]
  %v130 = vld [vmem:[%s0 + $0x388] sm:$0xff]
  %v131 = vld [vmem:[%s0 + $0x390] sm:$0xff]
  %v132 = vld [vmem:[%s0 + $0x398] sm:$0xff]
  %v133 = vld [vmem:[%s0 + $0x3a0] sm:$0xff]
  %v134 = vld [vmem:[%s0 + $0x3a8] sm:$0xff]
  %v135 = vld [vmem:[%s0 + $0x3b0] sm:$0xff]
  %v136 = vld [vmem:[%s0 + $0x3b8] sm:$0xff]
  %v137 = vld [vmem:[%s0 + $0x3c0] sm:$0xff]
  %v138 = vld [vmem:[%s0 + $0x3c8] sm:$0xff]
  %v139 = vld [vmem:[%s0 + $0x3d0] sm:$0xff]
  %v140 = vld [vmem:[%s0 + $0x3d8] sm:$0xff]
  %v141 = vld [vmem:[%s0 + $0x3e0] sm:$0xff]
  %v142 = vld [vmem:[%s0 + $0x3e8] sm:$0xff]
  %v143 = vld [vmem:[%s0 + $0x3f0] sm:$0xff]
  %v144 = vld [vmem:[%s0 + $0x3f8] sm:$0xff]
  %v145 = vld [vmem:[%s1] sm:$0xff]
  %v146 = vld [vmem:[%s1 + $0x8] sm:$0xff]
  %v147 = vld [vmem:[%s1 + $0x10] sm:$0xff]
  %v148 = vld [vmem:[%s1 + $0x18] sm:$0xff]
  %v149 = vld [vmem:[%s1 + $0x20] sm:$0xff]
  %v150 = vld [vmem:[%s1 + $0x28] sm:$0xff]
  %v151 = vld [vmem:[%s1 + $0x30] sm:$0xff]
  %v152 = vld [vmem:[%s1 + $0x38] sm:$0xff]
  %v153 = vld [vmem:[%s1 + $0x40] sm:$0xff]
  %v154 = vld [vmem:[%s1 + $0x48] sm:$0xff]
  %v155 = vld [vmem:[%s1 + $0x50] sm:$0xff]
  %v156 = vld [vmem:[%s1 + $0x58] sm:$0xff]
  %v157 = vld [vmem:[%s1 + $0x60] sm:$0xff]
  %v158 = vld [vmem:[%s1 + $0x68] sm:$0xff]
  %v159 = vld [vmem:[%s1 + $0x70] sm:$0xff]
  %v160 = vld [vmem:[%s1 + $0x78] sm:$0xff]
  %v161 = vld [vmem:[%s1 + $0x80] sm:$0xff]
  %v162 = vld [vmem:[%s1 + $0x88] sm:$0xff]
  %v163 = vld [vmem:[%s1 + $0x90] sm:$0xff]
  %v164 = vld [vmem:[%s1 + $0x98] sm:$0xff]
  %v165 = vld [vmem:[%s1 + $0xa0] sm:$0xff]
  %v166 = vld [vmem:[%s1 + $0xa8] sm:$0xff]
  %v167 = vld [vmem:[%s1 + $0xb0] sm:$0xff]
  %v168 = vld [vmem:[%s1 + $0xb8] sm:$0xff]
  %v169 = vld [vmem:[%s1 + $0xc0] sm:$0xff]
  %v170 = vld [vmem:[%s1 + $0xc8] sm:$0xff]
  %v171 = vld [vmem:[%s1 + $0xd0] sm:$0xff]
  %v172 = vld [vmem:[%s1 + $0xd8] sm:$0xff]
  %v173 = vld [vmem:[%s1 + $0xe0] sm:$0xff]
  %v174 = vld [vmem:[%s1 + $0xe8] sm:$0xff]
  %v175 = vld [vmem:[%s1 + $0xf0] sm:$0xff]
  %v176 = vld [vmem:[%s1 + $0xf8] sm:$0xff]
  %v177 = vld [vmem:[%s1 + $0x100] sm:$0xff]
  %v178 = vld [vmem:[%s1 + $0x108] sm:$0xff]
  %v179 = vld [vmem:[%s1 + $0x110] sm:$0xff]
  %v180 = vld [vmem:[%s1 + $0x118] sm:$0xff]
  %v181 = vld [vmem:[%s1 + $0x120] sm:$0xff]
  %v182 = vld [vmem:[%s1 + $0x128] sm:$0xff]
  %v183 = vld [vmem:[%s1 + $0x130] sm:$0xff]
  %v184 = vld [vmem:[%s1 + $0x138] sm:$0xff]
  %v185 = vld [vmem:[%s1 + $0x140] sm:$0xff]
  %v186 = vld [vmem:[%s1 + $0x148] sm:$0xff]
  %v187 = vld [vmem:[%s1 + $0x150] sm:$0xff]
  %v188 = vld [vmem:[%s1 + $0x158] sm:$0xff]
  %v189 = vld [vmem:[%s1 + $0x160] sm:$0xff]
  %v190 = vld [vmem:[%s1 + $0x168] sm:$0xff]
  %v191 = vld [vmem:[%s1 + $0x170] sm:$0xff]
  %v192 = vld [vmem:[%s1 + $0x178] sm:$0xff]
  %v193 = vld [vmem:[%s1 + $0x180] sm:$0xff]
  %v194 = vld [vmem:[%s1 + $0x188] sm:$0xff]
  %vm195 = vcmask 588800
  %v197 = vsel %vm195, %v18, 0
  %v200 = vsel %vm195, %v20, 0
  %v203 = vsel %vm195, %v22, 0
  %v206 = vsel %vm195, %v24, 0
  %v209 = vsel %vm195, %v26, 0
  %v212 = vsel %vm195, %v28, 0
  %v215 = vsel %vm195, %v30, 0
  %v218 = vsel %vm195, %v32, 0
  %v221 = vsel %vm195, %v34, 0
  %v224 = vsel %vm195, %v36, 0
  %v227 = vsel %vm195, %v38, 0
  %v230 = vsel %vm195, %v40, 0
  %v233 = vsel %vm195, %v42, 0
  %v236 = vsel %vm195, %v44, 0
  %v239 = vsel %vm195, %v46, 0
  %v242 = vsel %vm195, %v48, 0
  %v245 = vsel %vm195, %v50, 0
  %v248 = vsel %vm195, %v52, 0
  %v251 = vsel %vm195, %v54, 0
  %v254 = vsel %vm195, %v56, 0
  %v257 = vsel %vm195, %v58, 0
  %v260 = vsel %vm195, %v60, 0
  %v263 = vsel %vm195, %v62, 0
  %v266 = vsel %vm195, %v64, 0
  %v269 = vsel %vm195, %v66, 0
  %v272 = vsel %vm195, %v68, 0
  %v275 = vsel %vm195, %v70, 0
  %v278 = vsel %vm195, %v72, 0
  %v281 = vsel %vm195, %v74, 0
  %v284 = vsel %vm195, %v76, 0
  %v287 = vsel %vm195, %v78, 0
  %v290 = vsel %vm195, %v80, 0
  %v293 = vsel %vm195, %v82, 0
  %v296 = vsel %vm195, %v84, 0
  %v299 = vsel %vm195, %v86, 0
  %v302 = vsel %vm195, %v88, 0
  %v305 = vsel %vm195, %v90, 0
  %v308 = vsel %vm195, %v92, 0
  %v311 = vsel %vm195, %v94, 0
  %v314 = vsel %vm195, %v96, 0
  %v317 = vsel %vm195, %v98, 0
  %v320 = vsel %vm195, %v100, 0
  %v323 = vsel %vm195, %v102, 0
  %v326 = vsel %vm195, %v104, 0
  %v329 = vsel %vm195, %v106, 0
  %v332 = vsel %vm195, %v108, 0
  %v335 = vsel %vm195, %v110, 0
  %v338 = vsel %vm195, %v112, 0
  %v341 = vsel %vm195, %v114, 0
  %v344 = vsel %vm195, %v116, 0
  %v347 = vsel %vm195, %v118, 0
  %v350 = vsel %vm195, %v120, 0
  %v353 = vsel %vm195, %v122, 0
  %v356 = vsel %vm195, %v124, 0
  %v359 = vsel %vm195, %v126, 0
  %v362 = vsel %vm195, %v128, 0
  %v365 = vsel %vm195, %v130, 0
  %v368 = vsel %vm195, %v132, 0
  %v371 = vsel %vm195, %v134, 0
  %v374 = vsel %vm195, %v136, 0
  %v377 = vsel %vm195, %v138, 0
  %v380 = vsel %vm195, %v140, 0
  %v383 = vsel %vm195, %v142, 0
  %v386 = vsel %vm195, %v144, 0
  %388 = vmatprep.subr.mxu0 %v176
  %389 = vmatpush1.msra.mxu0 %v175
  %390 = vmatprep.subr.mxu0 %v174
  %391 = vmatpush1.msra.mxu0 %v173
  %392 = vmatprep.subr.mxu0 %v172
  %393 = vmatpush1.msra.mxu0 %v171
  %394 = vmatprep.subr.mxu0 %v170
  %395 = vmatpush1.msra.mxu0 %v169
  %396 = vmatprep.subr.mxu0 %v168
  %397 = vmatpush1.msra.mxu0 %v167
  %398 = vmatprep.subr.mxu0 %v166
  %399 = vmatpush1.msra.mxu0 %v165
  %400 = vmatprep.subr.mxu0 %v164
  %401 = vmatpush1.msra.mxu0 %v163
  %402 = vmatprep.subr.mxu0 %v162
  %403 = vmatpush1.msra.mxu0 %v161
  %404 = vmatprep.subr.mxu0 %v160
  %405 = vmatpush1.msra.mxu0 %v159
  %406 = vmatprep.subr.mxu0 %v158
  %407 = vmatpush1.msra.mxu0 %v157
  %408 = vmatprep.subr.mxu0 %v156
  %409 = vmatpush1.msra.mxu0 %v155
  %410 = vmatprep.subr.mxu0 %v154
  %411 = vmatpush1.msra.mxu0 %v153
  %412 = vmatprep.subr.mxu0 %v152
  %413 = vmatpush1.msra.mxu0 %v151
  %414 = vmatprep.subr.mxu0 %v150
  %415 = vmatpush1.msra.mxu0 %v149
  %416 = vmatprep.subr.mxu0 %v148
  %417 = vmatpush1.msra.mxu0 %v147
  %418 = vmatprep.subr.mxu0 %v146
  %419 = vmatpush1.msra.mxu0 %v145
  %420 = vmatprep.subr.mxu0 0.0
  %421 = vmatpush2.msra.mxu0 0.0
  %422 = vmatprep.subr.mxu0 0.0
  %423 = vmatpush2.msra.mxu0 0.0
  %424 = vmatprep.subr.mxu0 0.0
  %425 = vmatpush2.msra.mxu0 0.0
  %426 = vmatprep.subr.mxu0 0.0
  %427 = vmatpush2.msra.mxu0 0.0
  %428 = vmatprep.subr.mxu0 0.0
  %429 = vmatpush2.msra.mxu0 0.0
  %430 = vmatprep.subr.mxu0 0.0
  %431 = vmatpush2.msra.mxu0 0.0
  %432 = vmatprep.subr.mxu0 0.0
  %433 = vmatpush2.msra.mxu0 0.0
  %434 = vmatprep.subr.mxu0 %v194
  %435 = vmatpush2.msra.mxu0 %v193
  %436 = vmatprep.subr.mxu0 %v192
  %437 = vmatpush2.msra.mxu0 %v191
  %438 = vmatprep.subr.mxu0 %v190
  %439 = vmatpush2.msra.mxu0 %v189
  %440 = vmatprep.subr.mxu0 %v188
  %441 = vmatpush2.msra.mxu0 %v187
  %442 = vmatprep.subr.mxu0 %v186
  %443 = vmatpush2.msra.mxu0 %v185
  %444 = vmatprep.subr.mxu0 %v184
  %445 = vmatpush2.msra.mxu0 %v183
  %446 = vmatprep.subr.mxu0 %v182
  %447 = vmatpush2.msra.mxu0 %v181
  %448 = vmatprep.subr.mxu0 %v180
  %449 = vmatpush2.msra.mxu0 %v179
  %450 = vmatprep.subr.mxu0 %v178
  %451 = vmatpush2.msra.mxu0 %v177
  %452 = vmatprep.mubr.f32.mxu0 %v197
  %453 = vmatmul.mubr.f32.gmra.mxu0 %v17
  %v454 = vpop.f32.mrf.mxu0
  %v455 = vadd.f32 0.0, %v454
  %v456 = vpop.f32.mrf.mxu0
  %v457 = vadd.f32 0.0, %v456
  %458 = vmatprep.mubr.f32.mxu0 %v200
  %459 = vmatmul.mubr.f32.gmra.mxu0 %v19
  %v460 = vpop.f32.mrf.mxu0
  %v461 = vadd.f32 0.0, %v460
  %v462 = vpop.f32.mrf.mxu0
  %v463 = vadd.f32 0.0, %v462
  %464 = vmatprep.mubr.f32.mxu0 %v203
  %465 = vmatmul.mubr.f32.gmra.mxu0 %v21
  %v466 = vpop.f32.mrf.mxu0
  %v467 = vadd.f32 0.0, %v466
  %v468 = vpop.f32.mrf.mxu0
  %v469 = vadd.f32 0.0, %v468
  %470 = vmatprep.mubr.f32.mxu0 %v206
  %471 = vmatmul.mubr.f32.gmra.mxu0 %v23
  %v472 = vpop.f32.mrf.mxu0
  %v473 = vadd.f32 0.0, %v472
  %v474 = vpop.f32.mrf.mxu0
  %v475 = vadd.f32 0.0, %v474
  %476 = vmatprep.mubr.f32.mxu0 %v209
  %477 = vmatmul.mubr.f32.gmra.mxu0 %v25
  %v478 = vpop.f32.mrf.mxu0
  %v479 = vadd.f32 0.0, %v478
  %v480 = vpop.f32.mrf.mxu0
  %v481 = vadd.f32 0.0, %v480
  %482 = vmatprep.mubr.f32.mxu0 %v212
  %483 = vmatmul.mubr.f32.gmra.mxu0 %v27
  %v484 = vpop.f32.mrf.mxu0
  %v485 = vadd.f32 0.0, %v484
  %v486 = vpop.f32.mrf.mxu0
  %v487 = vadd.f32 0.0, %v486
  %488 = vmatprep.mubr.f32.mxu0 %v215
  %489 = vmatmul.mubr.f32.gmra.mxu0 %v29
  %v490 = vpop.f32.mrf.mxu0
  %v491 = vadd.f32 0.0, %v490
  %v492 = vpop.f32.mrf.mxu0
  %v493 = vadd.f32 0.0, %v492
  %494 = vmatprep.mubr.f32.mxu0 %v218
  %495 = vmatmul.mubr.f32.gmra.mxu0 %v31
  %v496 = vpop.f32.mrf.mxu0
  %v497 = vadd.f32 0.0, %v496
  %v498 = vpop.f32.mrf.mxu0
  %v499 = vadd.f32 0.0, %v498
  %500 = vmatprep.mubr.f32.mxu0 %v221
  %501 = vmatmul.mubr.f32.gmra.mxu0 %v33
  %v502 = vpop.f32.mrf.mxu0
  %v503 = vadd.f32 0.0, %v502
  %v504 = vpop.f32.mrf.mxu0
  %v505 = vadd.f32 0.0, %v504
  %506 = vmatprep.mubr.f32.mxu0 %v224
  %507 = vmatmul.mubr.f32.gmra.mxu0 %v35
  %v508 = vpop.f32.mrf.mxu0
  %v509 = vadd.f32 0.0, %v508
  %v510 = vpop.f32.mrf.mxu0
  %v511 = vadd.f32 0.0, %v510
  %512 = vmatprep.mubr.f32.mxu0 %v227
  %513 = vmatmul.mubr.f32.gmra.mxu0 %v37
  %v514 = vpop.f32.mrf.mxu0
  %v515 = vadd.f32 0.0, %v514
  %v516 = vpop.f32.mrf.mxu0
  %v517 = vadd.f32 0.0, %v516
  %518 = vmatprep.mubr.f32.mxu0 %v230
  %519 = vmatmul.mubr.f32.gmra.mxu0 %v39
  %v520 = vpop.f32.mrf.mxu0
  %v521 = vadd.f32 0.0, %v520
  %v522 = vpop.f32.mrf.mxu0
  %v523 = vadd.f32 0.0, %v522
  %524 = vmatprep.mubr.f32.mxu0 %v233
  %525 = vmatmul.mubr.f32.gmra.mxu0 %v41
  %v526 = vpop.f32.mrf.mxu0
  %v527 = vadd.f32 0.0, %v526
  %v528 = vpop.f32.mrf.mxu0
  %v529 = vadd.f32 0.0, %v528
  %530 = vmatprep.mubr.f32.mxu0 %v236
  %531 = vmatmul.mubr.f32.gmra.mxu0 %v43
  %v532 = vpop.f32.mrf.mxu0
  %v533 = vadd.f32 0.0, %v532
  %v534 = vpop.f32.mrf.mxu0
  %v535 = vadd.f32 0.0, %v534
  %536 = vmatprep.mubr.f32.mxu0 %v239
  %537 = vmatmul.mubr.f32.gmra.mxu0 %v45
  %v538 = vpop.f32.mrf.mxu0
  %v539 = vadd.f32 0.0, %v538
  %v540 = vpop.f32.mrf.mxu0
  %v541 = vadd.f32 0.0, %v540
  %542 = vmatprep.mubr.f32.mxu0 %v242
  %543 = vmatmul.mubr.f32.gmra.mxu0 %v47
  %v544 = vpop.f32.mrf.mxu0
  %v545 = vadd.f32 0.0, %v544
  %v546 = vpop.f32.mrf.mxu0
  %v547 = vadd.f32 0.0, %v546
  %548 = vmatprep.mubr.f32.mxu0 %v245
  %549 = vmatmul.mubr.f32.gmra.mxu0 %v49
  %v550 = vpop.f32.mrf.mxu0
  %v551 = vadd.f32 0.0, %v550
  %v552 = vpop.f32.mrf.mxu0
  %v553 = vadd.f32 0.0, %v552
  %554 = vmatprep.mubr.f32.mxu0 %v248
  %555 = vmatmul.mubr.f32.gmra.mxu0 %v51
  %v556 = vpop.f32.mrf.mxu0
  %v557 = vadd.f32 0.0, %v556
  %v558 = vpop.f32.mrf.mxu0
  %v559 = vadd.f32 0.0, %v558
  %560 = vmatprep.mubr.f32.mxu0 %v251
  %561 = vmatmul.mubr.f32.gmra.mxu0 %v53
  %v562 = vpop.f32.mrf.mxu0
  %v563 = vadd.f32 0.0, %v562
  %v564 = vpop.f32.mrf.mxu0
  %v565 = vadd.f32 0.0, %v564
  %566 = vmatprep.mubr.f32.mxu0 %v254
  %567 = vmatmul.mubr.f32.gmra.mxu0 %v55
  %v568 = vpop.f32.mrf.mxu0
  %v569 = vadd.f32 0.0, %v568
  %v570 = vpop.f32.mrf.mxu0
  %v571 = vadd.f32 0.0, %v570
  %572 = vmatprep.mubr.f32.mxu0 %v257
  %573 = vmatmul.mubr.f32.gmra.mxu0 %v57
  %v574 = vpop.f32.mrf.mxu0
  %v575 = vadd.f32 0.0, %v574
  %v576 = vpop.f32.mrf.mxu0
  %v577 = vadd.f32 0.0, %v576
  %578 = vmatprep.mubr.f32.mxu0 %v260
  %579 = vmatmul.mubr.f32.gmra.mxu0 %v59
  %v580 = vpop.f32.mrf.mxu0
  %v581 = vadd.f32 0.0, %v580
  %v582 = vpop.f32.mrf.mxu0
  %v583 = vadd.f32 0.0, %v582
  %584 = vmatprep.mubr.f32.mxu0 %v263
  %585 = vmatmul.mubr.f32.gmra.mxu0 %v61
  %v586 = vpop.f32.mrf.mxu0
  %v587 = vadd.f32 0.0, %v586
  %v588 = vpop.f32.mrf.mxu0
  %v589 = vadd.f32 0.0, %v588
  %590 = vmatprep.mubr.f32.mxu0 %v266
  %591 = vmatmul.mubr.f32.gmra.mxu0 %v63
  %v592 = vpop.f32.mrf.mxu0
  %v593 = vadd.f32 0.0, %v592
  %v594 = vpop.f32.mrf.mxu0
  %v595 = vadd.f32 0.0, %v594
  %596 = vmatprep.mubr.f32.mxu0 %v269
  %597 = vmatmul.mubr.f32.gmra.mxu0 %v65
  %v598 = vpop.f32.mrf.mxu0
  %v599 = vadd.f32 0.0, %v598
  %v600 = vpop.f32.mrf.mxu0
  %v601 = vadd.f32 0.0, %v600
  %602 = vmatprep.mubr.f32.mxu0 %v272
  %603 = vmatmul.mubr.f32.gmra.mxu0 %v67
  %v604 = vpop.f32.mrf.mxu0
  %v605 = vadd.f32 0.0, %v604
  %v606 = vpop.f32.mrf.mxu0
  %v607 = vadd.f32 0.0, %v606
  %608 = vmatprep.mubr.f32.mxu0 %v275
  %609 = vmatmul.mubr.f32.gmra.mxu0 %v69
  %v610 = vpop.f32.mrf.mxu0
  %v611 = vadd.f32 0.0, %v610
  %v612 = vpop.f32.mrf.mxu0
  %v613 = vadd.f32 0.0, %v612
  %614 = vmatprep.mubr.f32.mxu0 %v278
  %615 = vmatmul.mubr.f32.gmra.mxu0 %v71
  %v616 = vpop.f32.mrf.mxu0
  %v617 = vadd.f32 0.0, %v616
  %v618 = vpop.f32.mrf.mxu0
  %v619 = vadd.f32 0.0, %v618
  %620 = vmatprep.mubr.f32.mxu0 %v281
  %621 = vmatmul.mubr.f32.gmra.mxu0 %v73
  %v622 = vpop.f32.mrf.mxu0
  %v623 = vadd.f32 0.0, %v622
  %v624 = vpop.f32.mrf.mxu0
  %v625 = vadd.f32 0.0, %v624
  %626 = vmatprep.mubr.f32.mxu0 %v284
  %627 = vmatmul.mubr.f32.gmra.mxu0 %v75
  %v628 = vpop.f32.mrf.mxu0
  %v629 = vadd.f32 0.0, %v628
  %v630 = vpop.f32.mrf.mxu0
  %v631 = vadd.f32 0.0, %v630
  %632 = vmatprep.mubr.f32.mxu0 %v287
  %633 = vmatmul.mubr.f32.gmra.mxu0 %v77
  %v634 = vpop.f32.mrf.mxu0
  %v635 = vadd.f32 0.0, %v634
  %v636 = vpop.f32.mrf.mxu0
  %v637 = vadd.f32 0.0, %v636
  %638 = vmatprep.mubr.f32.mxu0 %v290
  %639 = vmatmul.mubr.f32.gmra.mxu0 %v79
  %v640 = vpop.f32.mrf.mxu0
  %v641 = vadd.f32 0.0, %v640
  %v642 = vpop.f32.mrf.mxu0
  %v643 = vadd.f32 0.0, %v642
  %644 = vmatprep.mubr.f32.mxu0 %v293
  %645 = vmatmul.mubr.f32.gmra.mxu0 %v81
  %v646 = vpop.f32.mrf.mxu0
  %v647 = vadd.f32 0.0, %v646
  %v648 = vpop.f32.mrf.mxu0
  %v649 = vadd.f32 0.0, %v648
  %650 = vmatprep.mubr.f32.mxu0 %v296
  %651 = vmatmul.mubr.f32.gmra.mxu0 %v83
  %v652 = vpop.f32.mrf.mxu0
  %v653 = vadd.f32 0.0, %v652
  %v654 = vpop.f32.mrf.mxu0
  %v655 = vadd.f32 0.0, %v654
  %656 = vmatprep.mubr.f32.mxu0 %v299
  %657 = vmatmul.mubr.f32.gmra.mxu0 %v85
  %v658 = vpop.f32.mrf.mxu0
  %v659 = vadd.f32 0.0, %v658
  %v660 = vpop.f32.mrf.mxu0
  %v661 = vadd.f32 0.0, %v660
  %662 = vmatprep.mubr.f32.mxu0 %v302
  %663 = vmatmul.mubr.f32.gmra.mxu0 %v87
  %v664 = vpop.f32.mrf.mxu0
  %v665 = vadd.f32 0.0, %v664
  %v666 = vpop.f32.mrf.mxu0
  %v667 = vadd.f32 0.0, %v666
  %668 = vmatprep.mubr.f32.mxu0 %v305
  %669 = vmatmul.mubr.f32.gmra.mxu0 %v89
  %v670 = vpop.f32.mrf.mxu0
  %v671 = vadd.f32 0.0, %v670
  %v672 = vpop.f32.mrf.mxu0
  %v673 = vadd.f32 0.0, %v672
  %674 = vmatprep.mubr.f32.mxu0 %v308
  %675 = vmatmul.mubr.f32.gmra.mxu0 %v91
  %v676 = vpop.f32.mrf.mxu0
  %v677 = vadd.f32 0.0, %v676
  %v678 = vpop.f32.mrf.mxu0
  %v679 = vadd.f32 0.0, %v678
  %680 = vmatprep.mubr.f32.mxu0 %v311
  %681 = vmatmul.mubr.f32.gmra.mxu0 %v93
  %v682 = vpop.f32.mrf.mxu0
  %v683 = vadd.f32 0.0, %v682
  %v684 = vpop.f32.mrf.mxu0
  %v685 = vadd.f32 0.0, %v684
  %686 = vmatprep.mubr.f32.mxu0 %v314
  %687 = vmatmul.mubr.f32.gmra.mxu0 %v95
  %v688 = vpop.f32.mrf.mxu0
  %v689 = vadd.f32 0.0, %v688
  %v690 = vpop.f32.mrf.mxu0
  %v691 = vadd.f32 0.0, %v690
  %692 = vmatprep.mubr.f32.mxu0 %v317
  %693 = vmatmul.mubr.f32.gmra.mxu0 %v97
  %v694 = vpop.f32.mrf.mxu0
  %v695 = vadd.f32 0.0, %v694
  %v696 = vpop.f32.mrf.mxu0
  %v697 = vadd.f32 0.0, %v696
  %698 = vmatprep.mubr.f32.mxu0 %v320
  %699 = vmatmul.mubr.f32.gmra.mxu0 %v99
  %v700 = vpop.f32.mrf.mxu0
  %v701 = vadd.f32 0.0, %v700
  %v702 = vpop.f32.mrf.mxu0
  %v703 = vadd.f32 0.0, %v702
  %704 = vmatprep.mubr.f32.mxu0 %v323
  %705 = vmatmul.mubr.f32.gmra.mxu0 %v101
  %v706 = vpop.f32.mrf.mxu0
  %v707 = vadd.f32 0.0, %v706
  %v708 = vpop.f32.mrf.mxu0
  %v709 = vadd.f32 0.0, %v708
  %710 = vmatprep.mubr.f32.mxu0 %v326
  %711 = vmatmul.mubr.f32.gmra.mxu0 %v103
  %v712 = vpop.f32.mrf.mxu0
  %v713 = vadd.f32 0.0, %v712
  %v714 = vpop.f32.mrf.mxu0
  %v715 = vadd.f32 0.0, %v714
  %716 = vmatprep.mubr.f32.mxu0 %v329
  %717 = vmatmul.mubr.f32.gmra.mxu0 %v105
  %v718 = vpop.f32.mrf.mxu0
  %v719 = vadd.f32 0.0, %v718
  %v720 = vpop.f32.mrf.mxu0
  %v721 = vadd.f32 0.0, %v720
  %722 = vmatprep.mubr.f32.mxu0 %v332
  %723 = vmatmul.mubr.f32.gmra.mxu0 %v107
  %v724 = vpop.f32.mrf.mxu0
  %v725 = vadd.f32 0.0, %v724
  %v726 = vpop.f32.mrf.mxu0
  %v727 = vadd.f32 0.0, %v726
  %728 = vmatprep.mubr.f32.mxu0 %v335
  %729 = vmatmul.mubr.f32.gmra.mxu0 %v109
  %v730 = vpop.f32.mrf.mxu0
  %v731 = vadd.f32 0.0, %v730
  %v732 = vpop.f32.mrf.mxu0
  %v733 = vadd.f32 0.0, %v732
  %734 = vmatprep.mubr.f32.mxu0 %v338
  %735 = vmatmul.mubr.f32.gmra.mxu0 %v111
  %v736 = vpop.f32.mrf.mxu0
  %v737 = vadd.f32 0.0, %v736
  %v738 = vpop.f32.mrf.mxu0
  %v739 = vadd.f32 0.0, %v738
  %740 = vmatprep.mubr.f32.mxu0 %v341
  %741 = vmatmul.mubr.f32.gmra.mxu0 %v113
  %v742 = vpop.f32.mrf.mxu0
  %v743 = vadd.f32 0.0, %v742
  %v744 = vpop.f32.mrf.mxu0
  %v745 = vadd.f32 0.0, %v744
  %746 = vmatprep.mubr.f32.mxu0 %v344
  %747 = vmatmul.mubr.f32.gmra.mxu0 %v115
  %v748 = vpop.f32.mrf.mxu0
  %v749 = vadd.f32 0.0, %v748
  %v750 = vpop.f32.mrf.mxu0
  %v751 = vadd.f32 0.0, %v750
  %752 = vmatprep.mubr.f32.mxu0 %v347
  %753 = vmatmul.mubr.f32.gmra.mxu0 %v117
  %v754 = vpop.f32.mrf.mxu0
  %v755 = vadd.f32 0.0, %v754
  %v756 = vpop.f32.mrf.mxu0
  %v757 = vadd.f32 0.0, %v756
  %758 = vmatprep.mubr.f32.mxu0 %v350
  %759 = vmatmul.mubr.f32.gmra.mxu0 %v119
  %v760 = vpop.f32.mrf.mxu0
  %v761 = vadd.f32 0.0, %v760
  %v762 = vpop.f32.mrf.mxu0
  %v763 = vadd.f32 0.0, %v762
  %764 = vmatprep.mubr.f32.mxu0 %v353
  %765 = vmatmul.mubr.f32.gmra.mxu0 %v121
  %v766 = vpop.f32.mrf.mxu0
  %v767 = vadd.f32 0.0, %v766
  %v768 = vpop.f32.mrf.mxu0
  %v769 = vadd.f32 0.0, %v768
  %770 = vmatprep.mubr.f32.mxu0 %v356
  %771 = vmatmul.mubr.f32.gmra.mxu0 %v123
  %v772 = vpop.f32.mrf.mxu0
  %v773 = vadd.f32 0.0, %v772
  %v774 = vpop.f32.mrf.mxu0
  %v775 = vadd.f32 0.0, %v774
  %776 = vmatprep.mubr.f32.mxu0 %v359
  %777 = vmatmul.mubr.f32.gmra.mxu0 %v125
  %v778 = vpop.f32.mrf.mxu0
  %v779 = vadd.f32 0.0, %v778
  %v780 = vpop.f32.mrf.mxu0
  %v781 = vadd.f32 0.0, %v780
  %782 = vmatprep.mubr.f32.mxu0 %v362
  %783 = vmatmul.mubr.f32.gmra.mxu0 %v127
  %v784 = vpop.f32.mrf.mxu0
  %v785 = vadd.f32 0.0, %v784
  %v786 = vpop.f32.mrf.mxu0
  %v787 = vadd.f32 0.0, %v786
  %788 = vmatprep.mubr.f32.mxu0 %v365
  %789 = vmatmul.mubr.f32.gmra.mxu0 %v129
  %v790 = vpop.f32.mrf.mxu0
  %v791 = vadd.f32 0.0, %v790
  %v792 = vpop.f32.mrf.mxu0
  %v793 = vadd.f32 0.0, %v792
  %794 = vmatprep.mubr.f32.mxu0 %v368
  %795 = vmatmul.mubr.f32.gmra.mxu0 %v131
  %v796 = vpop.f32.mrf.mxu0
  %v797 = vadd.f32 0.0, %v796
  %v798 = vpop.f32.mrf.mxu0
  %v799 = vadd.f32 0.0, %v798
  %800 = vmatprep.mubr.f32.mxu0 %v371
  %801 = vmatmul.mubr.f32.gmra.mxu0 %v133
  %v802 = vpop.f32.mrf.mxu0
  %v803 = vadd.f32 0.0, %v802
  %v804 = vpop.f32.mrf.mxu0
  %v805 = vadd.f32 0.0, %v804
  %806 = vmatprep.mubr.f32.mxu0 %v374
  %807 = vmatmul.mubr.f32.gmra.mxu0 %v135
  %v808 = vpop.f32.mrf.mxu0
  %v809 = vadd.f32 0.0, %v808
  %v810 = vpop.f32.mrf.mxu0
  %v811 = vadd.f32 0.0, %v810
  %812 = vmatprep.mubr.f32.mxu0 %v377
  %813 = vmatmul.mubr.f32.gmra.mxu0 %v137
  %v814 = vpop.f32.mrf.mxu0
  %v815 = vadd.f32 0.0, %v814
  %v816 = vpop.f32.mrf.mxu0
  %v817 = vadd.f32 0.0, %v816
  %818 = vmatprep.mubr.f32.mxu0 %v380
  %819 = vmatmul.mubr.f32.gmra.mxu0 %v139
  %v820 = vpop.f32.mrf.mxu0
  %v821 = vadd.f32 0.0, %v820
  %v822 = vpop.f32.mrf.mxu0
  %v823 = vadd.f32 0.0, %v822
  %824 = vmatprep.mubr.f32.mxu0 %v383
  %825 = vmatmul.mubr.f32.gmra.mxu0 %v141
  %v826 = vpop.f32.mrf.mxu0
  %v827 = vadd.f32 0.0, %v826
  %v828 = vpop.f32.mrf.mxu0
  %v829 = vadd.f32 0.0, %v828
  %830 = vmatprep.mubr.f32.mxu0 %v386
  %831 = vmatmul.mubr.f32.gmra.mxu0 %v143
  %v832 = vpop.f32.mrf.mxu0
  %v833 = vadd.f32 0.0, %v832
  %v834 = vpop.f32.mrf.mxu0
  %v835 = vadd.f32 0.0, %v834
  %836 = vdwg.mxu0
  %v837 = vld [vmem:[%s2] sm:$0x3]
  %v838 = vld [vmem:[%s3] sm:$0x3]
  %v840 = vlaneseq
  %v841 = vshrl.u32 %v840, 7
  %v842 = vsub.s32 0, %v841
  %v843 = vrot.slane %v837, %v842
  %v844 = vlaneseq
  %v845 = vshrl.u32 %v844, 7
  %v846 = vsub.s32 1, %v845
  %v847 = vrot.slane %v837, %v846
  %v850 = vmul.f32 %v455, %v843
  %v851 = vmul.f32 %v457, %v847
  %v852 = vmul.f32 %v461, %v843
  %v853 = vmul.f32 %v463, %v847
  %v854 = vmul.f32 %v467, %v843
  %v855 = vmul.f32 %v469, %v847
  %v856 = vmul.f32 %v473, %v843
  %v857 = vmul.f32 %v475, %v847
  %v858 = vmul.f32 %v479, %v843
  %v859 = vmul.f32 %v481, %v847
  %v860 = vmul.f32 %v485, %v843
  %v861 = vmul.f32 %v487, %v847
  %v862 = vmul.f32 %v491, %v843
  %v863 = vmul.f32 %v493, %v847
  %v864 = vmul.f32 %v497, %v843
  %v865 = vmul.f32 %v499, %v847
  %v866 = vmul.f32 %v503, %v843
  %v867 = vmul.f32 %v505, %v847
  %v868 = vmul.f32 %v509, %v843
  %v869 = vmul.f32 %v511, %v847
  %v870 = vmul.f32 %v515, %v843
  %v871 = vmul.f32 %v517, %v847
  %v872 = vmul.f32 %v521, %v843
  %v873 = vmul.f32 %v523, %v847
  %v874 = vmul.f32 %v527, %v843
  %v875 = vmul.f32 %v529, %v847
  %v876 = vmul.f32 %v533, %v843
  %v877 = vmul.f32 %v535, %v847
  %v878 = vmul.f32 %v539, %v843
  %v879 = vmul.f32 %v541, %v847
  %v880 = vmul.f32 %v545, %v843
  %v881 = vmul.f32 %v547, %v847
  %v882 = vmul.f32 %v551, %v843
  %v883 = vmul.f32 %v553, %v847
  %v884 = vmul.f32 %v557, %v843
  %v885 = vmul.f32 %v559, %v847
  %v886 = vmul.f32 %v563, %v843
  %v887 = vmul.f32 %v565, %v847
  %v888 = vmul.f32 %v569, %v843
  %v889 = vmul.f32 %v571, %v847
  %v890 = vmul.f32 %v575, %v843
  %v891 = vmul.f32 %v577, %v847
  %v892 = vmul.f32 %v581, %v843
  %v893 = vmul.f32 %v583, %v847
  %v894 = vmul.f32 %v587, %v843
  %v895 = vmul.f32 %v589, %v847
  %v896 = vmul.f32 %v593, %v843
  %v897 = vmul.f32 %v595, %v847
  %v898 = vmul.f32 %v599, %v843
  %v899 = vmul.f32 %v601, %v847
  %v900 = vmul.f32 %v605, %v843
  %v901 = vmul.f32 %v607, %v847
  %v902 = vmul.f32 %v611, %v843
  %v903 = vmul.f32 %v613, %v847
  %v904 = vmul.f32 %v617, %v843
  %v905 = vmul.f32 %v619, %v847
  %v906 = vmul.f32 %v623, %v843
  %v907 = vmul.f32 %v625, %v847
  %v908 = vmul.f32 %v629, %v843
  %v909 = vmul.f32 %v631, %v847
  %v910 = vmul.f32 %v635, %v843
  %v911 = vmul.f32 %v637, %v847
  %v912 = vmul.f32 %v641, %v843
  %v913 = vmul.f32 %v643, %v847
  %v914 = vmul.f32 %v647, %v843
  %v915 = vmul.f32 %v649, %v847
  %v916 = vmul.f32 %v653, %v843
  %v917 = vmul.f32 %v655, %v847
  %v918 = vmul.f32 %v659, %v843
  %v919 = vmul.f32 %v661, %v847
  %v920 = vmul.f32 %v665, %v843
  %v921 = vmul.f32 %v667, %v847
  %v922 = vmul.f32 %v671, %v843
  %v923 = vmul.f32 %v673, %v847
  %v924 = vmul.f32 %v677, %v843
  %v925 = vmul.f32 %v679, %v847
  %v926 = vmul.f32 %v683, %v843
  %v927 = vmul.f32 %v685, %v847
  %v928 = vmul.f32 %v689, %v843
  %v929 = vmul.f32 %v691, %v847
  %v930 = vmul.f32 %v695, %v843
  %v931 = vmul.f32 %v697, %v847
  %v932 = vmul.f32 %v701, %v843
  %v933 = vmul.f32 %v703, %v847
  %v934 = vmul.f32 %v707, %v843
  %v935 = vmul.f32 %v709, %v847
  %v936 = vmul.f32 %v713, %v843
  %v937 = vmul.f32 %v715, %v847
  %v938 = vmul.f32 %v719, %v843
  %v939 = vmul.f32 %v721, %v847
  %v940 = vmul.f32 %v725, %v843
  %v941 = vmul.f32 %v727, %v847
  %v942 = vmul.f32 %v731, %v843
  %v943 = vmul.f32 %v733, %v847
  %v944 = vmul.f32 %v737, %v843
  %v945 = vmul.f32 %v739, %v847
  %v946 = vmul.f32 %v743, %v843
  %v947 = vmul.f32 %v745, %v847
  %v948 = vmul.f32 %v749, %v843
  %v949 = vmul.f32 %v751, %v847
  %v950 = vmul.f32 %v755, %v843
  %v951 = vmul.f32 %v757, %v847
  %v952 = vmul.f32 %v761, %v843
  %v953 = vmul.f32 %v763, %v847
  %v954 = vmul.f32 %v767, %v843
  %v955 = vmul.f32 %v769, %v847
  %v956 = vmul.f32 %v773, %v843
  %v957 = vmul.f32 %v775, %v847
  %v958 = vmul.f32 %v779, %v843
  %v959 = vmul.f32 %v781, %v847
  %v960 = vmul.f32 %v785, %v843
  %v961 = vmul.f32 %v787, %v847
  %v962 = vmul.f32 %v791, %v843
  %v963 = vmul.f32 %v793, %v847
  %v964 = vmul.f32 %v797, %v843
  %v965 = vmul.f32 %v799, %v847
  %v966 = vmul.f32 %v803, %v843
  %v967 = vmul.f32 %v805, %v847
  %v968 = vmul.f32 %v809, %v843
  %v969 = vmul.f32 %v811, %v847
  %v970 = vmul.f32 %v815, %v843
  %v971 = vmul.f32 %v817, %v847
  %v972 = vmul.f32 %v821, %v843
  %v973 = vmul.f32 %v823, %v847
  %v974 = vmul.f32 %v827, %v843
  %v975 = vmul.f32 %v829, %v847
  %v976 = vmul.f32 %v833, %v843
  %v977 = vmul.f32 %v835, %v847
  %v979 = vlaneseq
  %v980 = vshrl.u32 %v979, 7
  %v981 = vsub.s32 0, %v980
  %v982 = vrot.slane %v838, %v981
  %v983 = vlaneseq
  %v984 = vshrl.u32 %v983, 7
  %v985 = vsub.s32 1, %v984
  %v986 = vrot.slane %v838, %v985
  %v989 = vadd.f32 %v850, %v982
  %v990 = vadd.f32 %v851, %v986
  %v991 = vadd.f32 %v852, %v982
  %v992 = vadd.f32 %v853, %v986
  %v993 = vadd.f32 %v854, %v982
  %v994 = vadd.f32 %v855, %v986
  %v995 = vadd.f32 %v856, %v982
  %v996 = vadd.f32 %v857, %v986
  %v997 = vadd.f32 %v858, %v982
  %v998 = vadd.f32 %v859, %v986
  %v999 = vadd.f32 %v860, %v982
  %v1000 = vadd.f32 %v861, %v986
  %v1001 = vadd.f32 %v862, %v982
  %v1002 = vadd.f32 %v863, %v986
  %v1003 = vadd.f32 %v864, %v982
  %v1004 = vadd.f32 %v865, %v986
  %v1005 = vadd.f32 %v866, %v982
  %v1006 = vadd.f32 %v867, %v986
  %v1007 = vadd.f32 %v868, %v982
  %v1008 = vadd.f32 %v869, %v986
  %v1009 = vadd.f32 %v870, %v982
  %v1010 = vadd.f32 %v871, %v986
  %v1011 = vadd.f32 %v872, %v982
  %v1012 = vadd.f32 %v873, %v986
  %v1013 = vadd.f32 %v874, %v982
  %v1014 = vadd.f32 %v875, %v986
  %v1015 = vadd.f32 %v876, %v982
  %v1016 = vadd.f32 %v877, %v986
  %v1017 = vadd.f32 %v878, %v982
  %v1018 = vadd.f32 %v879, %v986
  %v1019 = vadd.f32 %v880, %v982
  %v1020 = vadd.f32 %v881, %v986
  %v1021 = vadd.f32 %v882, %v982
  %v1022 = vadd.f32 %v883, %v986
  %v1023 = vadd.f32 %v884, %v982
  %v1024 = vadd.f32 %v885, %v986
  %v1025 = vadd.f32 %v886, %v982
  %v1026 = vadd.f32 %v887, %v986
  %v1027 = vadd.f32 %v888, %v982
  %v1028 = vadd.f32 %v889, %v986
  %v1029 = vadd.f32 %v890, %v982
  %v1030 = vadd.f32 %v891, %v986
  %v1031 = vadd.f32 %v892, %v982
  %v1032 = vadd.f32 %v893, %v986
  %v1033 = vadd.f32 %v894, %v982
  %v1034 = vadd.f32 %v895, %v986
  %v1035 = vadd.f32 %v896, %v982
  %v1036 = vadd.f32 %v897, %v986
  %v1037 = vadd.f32 %v898, %v982
  %v1038 = vadd.f32 %v899, %v986
  %v1039 = vadd.f32 %v900, %v982
  %v1040 = vadd.f32 %v901, %v986
  %v1041 = vadd.f32 %v902, %v982
  %v1042 = vadd.f32 %v903, %v986
  %v1043 = vadd.f32 %v904, %v982
  %v1044 = vadd.f32 %v905, %v986
  %v1045 = vadd.f32 %v906, %v982
  %v1046 = vadd.f32 %v907, %v986
  %v1047 = vadd.f32 %v908, %v982
  %v1048 = vadd.f32 %v909, %v986
  %v1049 = vadd.f32 %v910, %v982
  %v1050 = vadd.f32 %v911, %v986
  %v1051 = vadd.f32 %v912, %v982
  %v1052 = vadd.f32 %v913, %v986
  %v1053 = vadd.f32 %v914, %v982
  %v1054 = vadd.f32 %v915, %v986
  %v1055 = vadd.f32 %v916, %v982
  %v1056 = vadd.f32 %v917, %v986
  %v1057 = vadd.f32 %v918, %v982
  %v1058 = vadd.f32 %v919, %v986
  %v1059 = vadd.f32 %v920, %v982
  %v1060 = vadd.f32 %v921, %v986
  %v1061 = vadd.f32 %v922, %v982
  %v1062 = vadd.f32 %v923, %v986
  %v1063 = vadd.f32 %v924, %v982
  %v1064 = vadd.f32 %v925, %v986
  %v1065 = vadd.f32 %v926, %v982
  %v1066 = vadd.f32 %v927, %v986
  %v1067 = vadd.f32 %v928, %v982
  %v1068 = vadd.f32 %v929, %v986
  %v1069 = vadd.f32 %v930, %v982
  %v1070 = vadd.f32 %v931, %v986
  %v1071 = vadd.f32 %v932, %v982
  %v1072 = vadd.f32 %v933, %v986
  %v1073 = vadd.f32 %v934, %v982
  %v1074 = vadd.f32 %v935, %v986
  %v1075 = vadd.f32 %v936, %v982
  %v1076 = vadd.f32 %v937, %v986
  %v1077 = vadd.f32 %v938, %v982
  %v1078 = vadd.f32 %v939, %v986
  %v1079 = vadd.f32 %v940, %v982
  %v1080 = vadd.f32 %v941, %v986
  %v1081 = vadd.f32 %v942, %v982
  %v1082 = vadd.f32 %v943, %v986
  %v1083 = vadd.f32 %v944, %v982
  %v1084 = vadd.f32 %v945, %v986
  %v1085 = vadd.f32 %v946, %v982
  %v1086 = vadd.f32 %v947, %v986
  %v1087 = vadd.f32 %v948, %v982
  %v1088 = vadd.f32 %v949, %v986
  %v1089 = vadd.f32 %v950, %v982
  %v1090 = vadd.f32 %v951, %v986
  %v1091 = vadd.f32 %v952, %v982
  %v1092 = vadd.f32 %v953, %v986
  %v1093 = vadd.f32 %v954, %v982
  %v1094 = vadd.f32 %v955, %v986
  %v1095 = vadd.f32 %v956, %v982
  %v1096 = vadd.f32 %v957, %v986
  %v1097 = vadd.f32 %v958, %v982
  %v1098 = vadd.f32 %v959, %v986
  %v1099 = vadd.f32 %v960, %v982
  %v1100 = vadd.f32 %v961, %v986
  %v1101 = vadd.f32 %v962, %v982
  %v1102 = vadd.f32 %v963, %v986
  %v1103 = vadd.f32 %v964, %v982
  %v1104 = vadd.f32 %v965, %v986
  %v1105 = vadd.f32 %v966, %v982
  %v1106 = vadd.f32 %v967, %v986
  %v1107 = vadd.f32 %v968, %v982
  %v1108 = vadd.f32 %v969, %v986
  %v1109 = vadd.f32 %v970, %v982
  %v1110 = vadd.f32 %v971, %v986
  %v1111 = vadd.f32 %v972, %v982
  %v1112 = vadd.f32 %v973, %v986
  %v1113 = vadd.f32 %v974, %v982
  %v1114 = vadd.f32 %v975, %v986
  %v1115 = vadd.f32 %v976, %v982
  %v1116 = vadd.f32 %v977, %v986
  %1117 = vst [vmem:[%s4] sm:$0xff] %v989
  %vm1118 = vcmask 179200
  %1119 = vst.msk [vmem:[%s4 + $0x8] sm:$0xff] %vm1118, %v990
  %1120 = vst [vmem:[%s4 + $0x10] sm:$0xff] %v991
  %1121 = vst.msk [vmem:[%s4 + $0x18] sm:$0xff] %vm1118, %v992
  %1122 = vst [vmem:[%s4 + $0x20] sm:$0xff] %v993
  %1123 = vst.msk [vmem:[%s4 + $0x28] sm:$0xff] %vm1118, %v994
  %1124 = vst [vmem:[%s4 + $0x30] sm:$0xff] %v995
  %1125 = vst.msk [vmem:[%s4 + $0x38] sm:$0xff] %vm1118, %v996
  %1126 = vst [vmem:[%s4 + $0x40] sm:$0xff] %v997
  %1127 = vst.msk [vmem:[%s4 + $0x48] sm:$0xff] %vm1118, %v998
  %1128 = vst [vmem:[%s4 + $0x50] sm:$0xff] %v999
  %1129 = vst.msk [vmem:[%s4 + $0x58] sm:$0xff] %vm1118, %v1000
  %1130 = vst [vmem:[%s4 + $0x60] sm:$0xff] %v1001
  %1131 = vst.msk [vmem:[%s4 + $0x68] sm:$0xff] %vm1118, %v1002
  %1132 = vst [vmem:[%s4 + $0x70] sm:$0xff] %v1003
  %1133 = vst.msk [vmem:[%s4 + $0x78] sm:$0xff] %vm1118, %v1004
  %1134 = vst [vmem:[%s4 + $0x80] sm:$0xff] %v1005
  %1135 = vst.msk [vmem:[%s4 + $0x88] sm:$0xff] %vm1118, %v1006
  %1136 = vst [vmem:[%s4 + $0x90] sm:$0xff] %v1007
  %1137 = vst.msk [vmem:[%s4 + $0x98] sm:$0xff] %vm1118, %v1008
  %1138 = vst [vmem:[%s4 + $0xa0] sm:$0xff] %v1009
  %1139 = vst.msk [vmem:[%s4 + $0xa8] sm:$0xff] %vm1118, %v1010
  %1140 = vst [vmem:[%s4 + $0xb0] sm:$0xff] %v1011
  %1141 = vst.msk [vmem:[%s4 + $0xb8] sm:$0xff] %vm1118, %v1012
  %1142 = vst [vmem:[%s4 + $0xc0] sm:$0xff] %v1013
  %1143 = vst.msk [vmem:[%s4 + $0xc8] sm:$0xff] %vm1118, %v1014
  %1144 = vst [vmem:[%s4 + $0xd0] sm:$0xff] %v1015
  %1145 = vst.msk [vmem:[%s4 + $0xd8] sm:$0xff] %vm1118, %v1016
  %1146 = vst [vmem:[%s4 + $0xe0] sm:$0xff] %v1017
  %1147 = vst.msk [vmem:[%s4 + $0xe8] sm:$0xff] %vm1118, %v1018
  %1148 = vst [vmem:[%s4 + $0xf0] sm:$0xff] %v1019
  %1149 = vst.msk [vmem:[%s4 + $0xf8] sm:$0xff] %vm1118, %v1020
  %1150 = vst [vmem:[%s4 + $0x100] sm:$0xff] %v1021
  %1151 = vst.msk [vmem:[%s4 + $0x108] sm:$0xff] %vm1118, %v1022
  %1152 = vst [vmem:[%s4 + $0x110] sm:$0xff] %v1023
  %1153 = vst.msk [vmem:[%s4 + $0x118] sm:$0xff] %vm1118, %v1024
  %1154 = vst [vmem:[%s4 + $0x120] sm:$0xff] %v1025
  %1155 = vst.msk [vmem:[%s4 + $0x128] sm:$0xff] %vm1118, %v1026
  %1156 = vst [vmem:[%s4 + $0x130] sm:$0xff] %v1027
  %1157 = vst.msk [vmem:[%s4 + $0x138] sm:$0xff] %vm1118, %v1028
  %1158 = vst [vmem:[%s4 + $0x140] sm:$0xff] %v1029
  %1159 = vst.msk [vmem:[%s4 + $0x148] sm:$0xff] %vm1118, %v1030
  %1160 = vst [vmem:[%s4 + $0x150] sm:$0xff] %v1031
  %1161 = vst.msk [vmem:[%s4 + $0x158] sm:$0xff] %vm1118, %v1032
  %1162 = vst [vmem:[%s4 + $0x160] sm:$0xff] %v1033
  %1163 = vst.msk [vmem:[%s4 + $0x168] sm:$0xff] %vm1118, %v1034
  %1164 = vst [vmem:[%s4 + $0x170] sm:$0xff] %v1035
  %1165 = vst.msk [vmem:[%s4 + $0x178] sm:$0xff] %vm1118, %v1036
  %1166 = vst [vmem:[%s4 + $0x180] sm:$0xff] %v1037
  %1167 = vst.msk [vmem:[%s4 + $0x188] sm:$0xff] %vm1118, %v1038
  %1168 = vst [vmem:[%s4 + $0x190] sm:$0xff] %v1039
  %1169 = vst.msk [vmem:[%s4 + $0x198] sm:$0xff] %vm1118, %v1040
  %1170 = vst [vmem:[%s4 + $0x1a0] sm:$0xff] %v1041
  %1171 = vst.msk [vmem:[%s4 + $0x1a8] sm:$0xff] %vm1118, %v1042
  %1172 = vst [vmem:[%s4 + $0x1b0] sm:$0xff] %v1043
  %1173 = vst.msk [vmem:[%s4 + $0x1b8] sm:$0xff] %vm1118, %v1044
  %1174 = vst [vmem:[%s4 + $0x1c0] sm:$0xff] %v1045
  %1175 = vst.msk [vmem:[%s4 + $0x1c8] sm:$0xff] %vm1118, %v1046
  %1176 = vst [vmem:[%s4 + $0x1d0] sm:$0xff] %v1047
  %1177 = vst.msk [vmem:[%s4 + $0x1d8] sm:$0xff] %vm1118, %v1048
  %1178 = vst [vmem:[%s4 + $0x1e0] sm:$0xff] %v1049
  %1179 = vst.msk [vmem:[%s4 + $0x1e8] sm:$0xff] %vm1118, %v1050
  %1180 = vst [vmem:[%s4 + $0x1f0] sm:$0xff] %v1051
  %1181 = vst.msk [vmem:[%s4 + $0x1f8] sm:$0xff] %vm1118, %v1052
  %1182 = vst [vmem:[%s4 + $0x200] sm:$0xff] %v1053
  %1183 = vst.msk [vmem:[%s4 + $0x208] sm:$0xff] %vm1118, %v1054
  %1184 = vst [vmem:[%s4 + $0x210] sm:$0xff] %v1055
  %1185 = vst.msk [vmem:[%s4 + $0x218] sm:$0xff] %vm1118, %v1056
  %1186 = vst [vmem:[%s4 + $0x220] sm:$0xff] %v1057
  %1187 = vst.msk [vmem:[%s4 + $0x228] sm:$0xff] %vm1118, %v1058
  %1188 = vst [vmem:[%s4 + $0x230] sm:$0xff] %v1059
  %1189 = vst.msk [vmem:[%s4 + $0x238] sm:$0xff] %vm1118, %v1060
  %1190 = vst [vmem:[%s4 + $0x240] sm:$0xff] %v1061
  %1191 = vst.msk [vmem:[%s4 + $0x248] sm:$0xff] %vm1118, %v1062
  %1192 = vst [vmem:[%s4 + $0x250] sm:$0xff] %v1063
  %1193 = vst.msk [vmem:[%s4 + $0x258] sm:$0xff] %vm1118, %v1064
  %1194 = vst [vmem:[%s4 + $0x260] sm:$0xff] %v1065
  %1195 = vst.msk [vmem:[%s4 + $0x268] sm:$0xff] %vm1118, %v1066
  %1196 = vst [vmem:[%s4 + $0x270] sm:$0xff] %v1067
  %1197 = vst.msk [vmem:[%s4 + $0x278] sm:$0xff] %vm1118, %v1068
  %1198 = vst [vmem:[%s4 + $0x280] sm:$0xff] %v1069
  %1199 = vst.msk [vmem:[%s4 + $0x288] sm:$0xff] %vm1118, %v1070
  %1200 = vst [vmem:[%s4 + $0x290] sm:$0xff] %v1071
  %1201 = vst.msk [vmem:[%s4 + $0x298] sm:$0xff] %vm1118, %v1072
  %1202 = vst [vmem:[%s4 + $0x2a0] sm:$0xff] %v1073
  %1203 = vst.msk [vmem:[%s4 + $0x2a8] sm:$0xff] %vm1118, %v1074
  %1204 = vst [vmem:[%s4 + $0x2b0] sm:$0xff] %v1075
  %1205 = vst.msk [vmem:[%s4 + $0x2b8] sm:$0xff] %vm1118, %v1076
  %1206 = vst [vmem:[%s4 + $0x2c0] sm:$0xff] %v1077
  %1207 = vst.msk [vmem:[%s4 + $0x2c8] sm:$0xff] %vm1118, %v1078
  %1208 = vst [vmem:[%s4 + $0x2d0] sm:$0xff] %v1079
  %1209 = vst.msk [vmem:[%s4 + $0x2d8] sm:$0xff] %vm1118, %v1080
  %1210 = vst [vmem:[%s4 + $0x2e0] sm:$0xff] %v1081
  %1211 = vst.msk [vmem:[%s4 + $0x2e8] sm:$0xff] %vm1118, %v1082
  %1212 = vst [vmem:[%s4 + $0x2f0] sm:$0xff] %v1083
  %1213 = vst.msk [vmem:[%s4 + $0x2f8] sm:$0xff] %vm1118, %v1084
  %1214 = vst [vmem:[%s4 + $0x300] sm:$0xff] %v1085
  %1215 = vst.msk [vmem:[%s4 + $0x308] sm:$0xff] %vm1118, %v1086
  %1216 = vst [vmem:[%s4 + $0x310] sm:$0xff] %v1087
  %1217 = vst.msk [vmem:[%s4 + $0x318] sm:$0xff] %vm1118, %v1088
  %1218 = vst [vmem:[%s4 + $0x320] sm:$0xff] %v1089
  %1219 = vst.msk [vmem:[%s4 + $0x328] sm:$0xff] %vm1118, %v1090
  %1220 = vst [vmem:[%s4 + $0x330] sm:$0xff] %v1091
  %1221 = vst.msk [vmem:[%s4 + $0x338] sm:$0xff] %vm1118, %v1092
  %1222 = vst [vmem:[%s4 + $0x340] sm:$0xff] %v1093
  %1223 = vst.msk [vmem:[%s4 + $0x348] sm:$0xff] %vm1118, %v1094
  %1224 = vst [vmem:[%s4 + $0x350] sm:$0xff] %v1095
  %1225 = vst.msk [vmem:[%s4 + $0x358] sm:$0xff] %vm1118, %v1096
  %1226 = vst [vmem:[%s4 + $0x360] sm:$0xff] %v1097
  %1227 = vst.msk [vmem:[%s4 + $0x368] sm:$0xff] %vm1118, %v1098
  %1228 = vst [vmem:[%s4 + $0x370] sm:$0xff] %v1099
  %1229 = vst.msk [vmem:[%s4 + $0x378] sm:$0xff] %vm1118, %v1100
  %1230 = vst [vmem:[%s4 + $0x380] sm:$0xff] %v1101
  %1231 = vst.msk [vmem:[%s4 + $0x388] sm:$0xff] %vm1118, %v1102
  %1232 = vst [vmem:[%s4 + $0x390] sm:$0xff] %v1103
  %1233 = vst.msk [vmem:[%s4 + $0x398] sm:$0xff] %vm1118, %v1104
  %1234 = vst [vmem:[%s4 + $0x3a0] sm:$0xff] %v1105
  %1235 = vst.msk [vmem:[%s4 + $0x3a8] sm:$0xff] %vm1118, %v1106
  %1236 = vst [vmem:[%s4 + $0x3b0] sm:$0xff] %v1107
  %1237 = vst.msk [vmem:[%s4 + $0x3b8] sm:$0xff] %vm1118, %v1108
  %1238 = vst [vmem:[%s4 + $0x3c0] sm:$0xff] %v1109
  %1239 = vst.msk [vmem:[%s4 + $0x3c8] sm:$0xff] %vm1118, %v1110
  %1240 = vst [vmem:[%s4 + $0x3d0] sm:$0xff] %v1111
  %1241 = vst.msk [vmem:[%s4 + $0x3d8] sm:$0xff] %vm1118, %v1112
  %1242 = vst [vmem:[%s4 + $0x3e0] sm:$0xff] %v1113
  %1243 = vst.msk [vmem:[%s4 + $0x3e8] sm:$0xff] %vm1118, %v1114
  %1244 = vst [vmem:[%s4 + $0x3f0] sm:$0xff] %v1115
  %1245 = vst.msk [vmem:[%s4 + $0x3f8] sm:$0xff] %vm1118, %v1116
  // Predicated region
  $region18: #{tpu_custom_call.1} parent=0 // pred_check
    _
  $region19: #{tpu_custom_call.1} parent=0 // pred_check_branch
    %1247 = sbr.rel (0) target = $region21
  $region20: #{tpu_custom_call.1} parent=0 // pred_region
    _
  $region21: #{tpu_custom_call.1} parent=0 // pred_fallthru
    _
  // Predicated region
  $region22: #{tpu_custom_call.1} parent=0 // pred_check
    _
  $region23: #{tpu_custom_call.1} parent=0 // pred_check_branch
    %1249 = sbr.rel (0) target = $region25
  $region24: #{tpu_custom_call.1} parent=0 // pred_region
    _
  $region25: #{tpu_custom_call.1} parent=0 // pred_fallthru
    _

</llo_original>
